<compile_context>
chip_gen: v6e
topology: v6e:2x2x1
jax: 0.10.0
libtpu: 0.0.40
codegen_flags: <defaults>
</compile_context>

<pallas_src>
import functools

import jax
import jax.numpy as jnp
from jax.experimental import pallas as pl
from jax.experimental.pallas import tpu as pltpu


def _cdiv(a: int, b: int) -> int:
    return -(-a // b)


def _round_up(x: int, m: int) -> int:
    return _cdiv(x, m) * m


_HAS_BUFFERED = hasattr(pl, "Buffered")


def _resident_spec(block_shape, index_map):
    """BlockSpec for an operand whose block index never changes.

    Single-buffering halves its VMEM footprint vs. the default Buffered(2);
    fall back gracefully if pipeline_mode isn't available.
    """
    if _HAS_BUFFERED:
        try:
            return pl.BlockSpec(block_shape, index_map,
                                pipeline_mode=pl.Buffered(1))
        except TypeError:
            pass
    return pl.BlockSpec(block_shape, index_map)


# -----------------------------------------------------------------------------
# Kernels
# -----------------------------------------------------------------------------
def _head_fast_kernel(x_ref, w1_ref, b1_ref, w2_ref, b2_ref, o_ref, *,
                      d_valid, mm_dtype):
    """Whole-D fast path: out = relu(x @ w1 + b1) @ w2 + b2 (no scratch)."""
    xb = x_ref[...].astype(mm_dtype)
    if d_valid is not None:
        # x block is lane-padded past D_in (no HBM copy was made); zero the
        # out-of-range columns so stale VMEM bytes can never reach the MXU.
        col = jax.lax.broadcasted_iota(jnp.int32, xb.shape, dimension=1)
        xb = jnp.where(col < d_valid, xb, jnp.zeros_like(xb))
    h = jnp.dot(xb, w1_ref[...], preferred_element_type=jnp.float32)
    h = jnp.maximum(h + b1_ref[...], 0.0)
    # TODO(synk): training-mode dropout not implemented; eval mode = identity.
    out = jnp.dot(h.astype(mm_dtype), w2_ref[...],
                  preferred_element_type=jnp.float32)
    o_ref[...] = (out + b2_ref[...]).astype(o_ref.dtype)


def _head_ktiled_kernel(x_ref, w1_ref, b1_ref, w2_ref, b2_ref, o_ref, acc_ref,
                        *, k_tail, mm_dtype):
    """K-tiled path: f32 accumulation of x @ w1 over the reduction grid axis."""
    k = pl.program_id(1)
    nk = pl.num_programs(1)

    @pl.when(k == 0)
    def _():
        acc_ref[...] = jnp.zeros_like(acc_ref)

    xb = x_ref[...].astype(mm_dtype)
    if k_tail is not None:
        # Last K tile extends past D_in (x is not padded in HBM): mask its tail.
        col = jax.lax.broadcasted_iota(jnp.int32, xb.shape, dimension=1)
        limit = jnp.where(k == nk - 1, k_tail, xb.shape[1])
        xb = jnp.where(col < limit, xb, jnp.zeros_like(xb))

    acc_ref[...] += jnp.dot(xb, w1_ref[...], preferred_element_type=jnp.float32)

    @pl.when(k == nk - 1)
    def _():
        h = jnp.maximum(acc_ref[...] + b1_ref[...], 0.0)
        # TODO(synk): training-mode dropout not implemented; eval mode = identity.
        out = jnp.dot(h.astype(mm_dtype), w2_ref[...],
                      preferred_element_type=jnp.float32)
        o_ref[...] = (out + b2_ref[...]).astype(o_ref.dtype)


# -----------------------------------------------------------------------------
# Parameter preparation (done once, NOT per forward call)
# -----------------------------------------------------------------------------
def prepare_params(w1, b1, w2, b2, param_dtype=jnp.bfloat16):
    """Pad weights to lane/sublane multiples of 128 and cast to bf16 ONCE.

    Zero padding is math-neutral: padded hidden columns stay 0 through ReLU
    and padded class columns are sliced off. Biases stay f32 (tiny).
    """
    D_in, H = w1.shape
    C = w2.shape[1]
    D_pad, H_pad, C_pad = (_round_up(d, 128) for d in (D_in, H, C))
    w1p = jnp.zeros((D_pad, H_pad), param_dtype).at[:D_in, :H].set(
        w1.astype(param_dtype))
    b1p = jnp.zeros((1, H_pad), jnp.float32).at[:, :H].set(
        jnp.asarray(b1, jnp.float32).reshape(1, H))
    w2p = jnp.zeros((H_pad, C_pad), param_dtype).at[:H, :C].set(
        w2.astype(param_dtype))
    b2p = jnp.zeros((1, C_pad), jnp.float32).at[:, :C].set(
        jnp.asarray(b2, jnp.float32).reshape(1, C))
    return {"w1": w1p, "b1": b1p, "w2": w2p, "b2": b2p,
            "input_dim": D_in, "hidden": H, "num_classes": C}


# -----------------------------------------------------------------------------
# Forward
# -----------------------------------------------------------------------------
def classification_head(x, params, *, batch_tile=512, force_k_tile=None):
    """x: (B, input_dim) -> logits (B, num_classes). params from prepare_params."""
    w1p, b1p, w2p, b2p = params["w1"], params["b1"], params["w2"], params["b2"]
    D_in = params["input_dim"]
    C = params["num_classes"]
    B = x.shape[0]
    assert x.shape == (B, D_in)
    D_pad, H_pad = w1p.shape
    C_pad = w2p.shape[1]
    mm_dtype = w1p.dtype
    x_it = jnp.dtype(x.dtype).itemsize
    o_it = x_it
    w_it = jnp.dtype(mm_dtype).itemsize

    # Physical VMEM per TensorCore, with 20% headroom so double-buffering of
    # streamed tiles survives (v5e/v6e: ~102 MiB usable, v7x: ~51 MiB).
    try:
        phys_vmem = int(pltpu.get_tpu_info().vmem_capacity_bytes)
    except Exception:
        phys_vmem = 64 * 1024 * 1024
    budget = int(phys_vmem * 0.8)

    # Batch tile: sublane multiple for the matmul dtype; >= 2 tiles when
    # possible so the "parallel" batch axis can shard across two TensorCores.
    sub = 16 if min(x_it, w_it) <= 2 else 8
    if B <= sub:
        TB = B
    else:
        TB = max(sub, min(batch_tile, _round_up(_cdiv(B, 2), sub)))

    def fast_bytes(tb):
        return (2 * tb * D_pad * x_it          # x tiles (double-buffered)
                + D_pad * H_pad * w_it         # w1 (resident, single-buffered)
                + H_pad * C_pad * w_it         # w2 (resident)
                + 8 * (H_pad + C_pad) * 4      # biases (sublane-padded, f32)
                + 2 * tb * C_pad * o_it        # out tiles (double-buffered)
                + tb * (H_pad + C_pad) * 4)    # f32 intermediates

    def ktiled_bytes(tb, tk):
        return (2 * tb * tk * x_it             # x K-tiles
                + 2 * tk * H_pad * w_it        # w1 K-tiles
                + H_pad * C_pad * w_it         # w2 (resident)
                + 8 * (H_pad + C_pad) * 4      # biases
                + 2 * tb * C_pad * o_it        # out tiles
                + tb * H_pad * 4               # f32 accumulator scratch
                + tb * (H_pad + C_pad) * 4)    # f32 intermediates

    if force_k_tile is not None:
        assert D_pad % force_k_tile == 0
        use_fast, TK = False, int(force_k_tile)
    elif fast_bytes(TB) <= budget:
        use_fast, TK = True, D_pad
    else:
        use_fast, TK = False, None
        for cand in (2048, 1024, 512, 256, 128):
            if D_pad % cand == 0 and ktiled_bytes(TB, cand) <= budget:
                TK = cand
                break
        if TK is None:
            TK = 128
            while TB > sub and ktiled_bytes(TB, TK) > budget:
                TB = max(sub, _round_up(TB // 2, sub))

    n_b = _cdiv(B, TB)
    footprint = fast_bytes(TB) if use_fast else ktiled_bytes(TB, TK)
    vmem_limit = int(min(budget, max(32 * 1024 * 1024, int(footprint * 1.25))))

    # Advisory cost: W1 is re-streamed once per batch tile on the K-tiled path.
    n_w1_reads = 1 if use_fast else n_b
    cost = pl.CostEstimate(
        flops=2 * B * D_pad * H_pad + 2 * B * H_pad * C_pad,
        transcendentals=0,
        bytes_accessed=int(B * D_in * x_it
                           + n_w1_reads * D_pad * H_pad * w_it
                           + H_pad * C_pad * w_it
                           + (H_pad + C_pad) * 4
                           + B * C_pad * o_it),
    )

    if use_fast:
        d_valid = D_in if D_in < D_pad else None
        kernel = functools.partial(_head_fast_kernel, d_valid=d_valid,
                                   mm_dtype=mm_dtype)
        grid_spec = pltpu.PrefetchScalarGridSpec(
            num_scalar_prefetch=0,
            grid=(n_b,),
            in_specs=[
                pl.BlockSpec((TB, D_pad), lambda i: (i, 0)),              # x
                _resident_spec((D_pad, H_pad), lambda i: (0, 0)),         # w1
                _resident_spec((1, H_pad), lambda i: (0, 0)),             # b1
                _resident_spec((H_pad, C_pad), lambda i: (0, 0)),         # w2
                _resident_spec((1, C_pad), lambda i: (0, 0)),             # b2
            ],
            out_specs=pl.BlockSpec((TB, C_pad), lambda i: (i, 0)),
        )
        dim_sem = ("parallel",)
    else:
        n_k = D_pad // TK
        tail = D_in - (n_k - 1) * TK
        k_tail = None if tail == TK else tail
        kernel = functools.partial(_head_ktiled_kernel, k_tail=k_tail,
                                   mm_dtype=mm_dtype)
        grid_spec = pltpu.PrefetchScalarGridSpec(
            num_scalar_prefetch=0,
            grid=(n_b, n_k),                          # reduction axis last
            in_specs=[
                pl.BlockSpec((TB, TK), lambda i, k: (i, k)),              # x
                pl.BlockSpec((TK, H_pad), lambda i, k: (k, 0)),           # w1
                _resident_spec((1, H_pad), lambda i, k: (0, 0)),          # b1
                _resident_spec((H_pad, C_pad), lambda i, k: (0, 0)),      # w2
                _resident_spec((1, C_pad), lambda i, k: (0, 0)),          # b2
            ],
            out_specs=pl.BlockSpec((TB, C_pad), lambda i, k: (i, 0)),
            scratch_shapes=[pltpu.VMEM((TB, H_pad), jnp.float32)],
        )
        dim_sem = ("parallel", "arbitrary")

    out_p = pl.pallas_call(
        kernel,
        out_shape=jax.ShapeDtypeStruct((B, C_pad), x.dtype),
        grid_spec=grid_spec,
        compiler_params=pltpu.CompilerParams(
            dimension_semantics=dim_sem,
            vmem_limit_bytes=vmem_limit),
        cost_estimate=cost,
    )(x, w1p, b1p, w2p, b2p)

    return out_p[:, :C]


# -----------------------------------------------------------------------------
# Synthetic init & reference
# -----------------------------------------------------------------------------
def init_params(key, input_dim, num_classes):
    """Deterministic synthetic init (Kaiming-uniform-like), stored as (in, out)."""
    hidden = input_dim // 2
    k1, k2, k3, k4 = jax.random.split(key, 4)
    lim1 = 1.0 / jnp.sqrt(input_dim)
    lim2 = 1.0 / jnp.sqrt(hidden)
    w1 = jax.random.uniform(k1, (input_dim, hidden), jnp.float32, -lim1, lim1)
    b1 = jax.random.uniform(k2, (1, hidden), jnp.float32, -lim1, lim1)
    w2 = jax.random.uniform(k3, (hidden, num_classes), jnp.float32, -lim2, lim2)
    b2 = jax.random.uniform(k4, (1, num_classes), jnp.float32, -lim2, lim2)
    return w1, b1, w2, b2


def _reference(x, params):
    """Plain-JAX reference using the same bf16 weight/activation quantization."""
    D_in, H, C = params["input_dim"], params["hidden"], params["num_classes"]
    mm_dtype = params["w1"].dtype
    w1 = params["w1"][:D_in, :H].astype(jnp.float32)
    w2 = params["w2"][:H, :C].astype(jnp.float32)
    b1 = params["b1"][:, :H]
    b2 = params["b2"][:, :C]
    xq = x.astype(mm_dtype).astype(jnp.float32)
    h = jnp.maximum(xq @ w1 + b1, 0.0)
    hq = h.astype(mm_dtype).astype(jnp.float32)
    return hq @ w2 + b2


if __name__ == "__main__":
    key = jax.random.PRNGKey(0)

    # --- Test 1: module-sized small shapes (fast path, no K reduction) ---
    batch, input_dim, num_classes = 2, 32, 4
    kx, kp, key = jax.random.split(key, 3)
    x = jax.random.normal(kx, (batch, input_dim), jnp.float32)
    params = prepare_params(*init_params(kp, input_dim, num_classes))
    logits = classification_head(x, params)
    jax.block_until_ready(logits)
    ref = _reference(x, params)
    assert logits.shape == (batch, num_classes)
    assert jnp.allclose(logits, ref, atol=2e-2, rtol=2e-2), \
        float(jnp.max(jnp.abs(logits - ref)))

    # --- Test 2: exercise the K-tiled reduction path (forced small TK) ---
    batch2, input_dim2, num_classes2 = 16, 320, 10
    kx2, kp2, key = jax.random.split(key, 3)
    x2 = jax.random.normal(kx2, (batch2, input_dim2), jnp.float32)
    params2 = prepare_params(*init_params(kp2, input_dim2, num_classes2))
    logits2 = classification_head(x2, params2, force_k_tile=128)
    jax.block_until_ready(logits2)
    ref2 = _reference(x2, params2)
    assert logits2.shape == (batch2, num_classes2)
    assert jnp.allclose(logits2, ref2, atol=2e-2, rtol=2e-2), \
        float(jnp.max(jnp.abs(logits2 - ref2)))

    print("KERNEL_OK")
</pallas_src>

<mosaic_0001>
module attributes {stable_mosaic.version = 11 : i64} {
  func.func @_head_fast_kernel(%arg0: i32, %arg1: memref<2x128xf32, #tpu.memory_space<vmem>>, %arg2: memref<128x128xbf16, #tpu.memory_space<vmem>>, %arg3: memref<1x128xf32, #tpu.memory_space<vmem>>, %arg4: memref<128x128xbf16, #tpu.memory_space<vmem>>, %arg5: memref<1x128xf32, #tpu.memory_space<vmem>>, %arg6: memref<2x128xf32, #tpu.memory_space<vmem>>) attributes {dimension_semantics = [#tpu.dimension_semantics<parallel>], iteration_bounds = array<i64: 1>, scalar_prefetch = 0 : i64, scratch_operands = 0 : i64, tpu.core_type = #tpu.core_type<tc>, window_params = [{transform_indices = @transform_0, window_bounds = array<i64: 2, 128>}, {pipeline_mode = #tpu.pipeline_mode<synchronous>, transform_indices = @transform_1, window_bounds = array<i64: 128, 128>}, {pipeline_mode = #tpu.pipeline_mode<synchronous>, transform_indices = @transform_2, window_bounds = array<i64: 1, 128>}, {pipeline_mode = #tpu.pipeline_mode<synchronous>, transform_indices = @transform_3, window_bounds = array<i64: 128, 128>}, {pipeline_mode = #tpu.pipeline_mode<synchronous>, transform_indices = @transform_4, window_bounds = array<i64: 1, 128>}, {transform_indices = @transform_5, window_bounds = array<i64: 2, 128>}]} {
    %c0 = arith.constant 0 : index
    %c0_0 = arith.constant 0 : index
    %0 = vector.load %arg1[%c0, %c0_0] : memref<2x128xf32, #tpu.memory_space<vmem>>, vector<2x128xf32>
    %1 = arith.truncf %0 : vector<2x128xf32> to vector<2x128xbf16>
    %2 = tpu.iota {dimensions = array<i32: 1>} : vector<2x128xi32>
    %c32_i32 = arith.constant 32 : i32
    %3 = vector.broadcast %c32_i32 : i32 to vector<2x128xi32>
    %4 = arith.cmpi slt, %2, %3 : vector<2x128xi32>
    %cst = arith.constant 0.000000e+00 : bf16
    %5 = vector.broadcast %cst : bf16 to vector<2x128xbf16>
    %6 = arith.select %4, %1, %5 : vector<2x128xi1>, vector<2x128xbf16>
    %c0_1 = arith.constant 0 : index
    %c0_2 = arith.constant 0 : index
    %7 = vector.load %arg2[%c0_1, %c0_2] : memref<128x128xbf16, #tpu.memory_space<vmem>>, vector<128x128xbf16>
    %cst_3 = arith.constant dense<0.000000e+00> : vector<2x128xf32>
    %8 = tpu.matmul %6, %7, %cst_3 {dimension_numbers = #tpu.dot_dimension_numbers<[1], [0], [0], [1], [0, 0, 1, 1], [], []>} : vector<2x128xbf16>, vector<128x128xbf16>, vector<2x128xf32> -> vector<2x128xf32>
    %c0_4 = arith.constant 0 : index
    %c0_5 = arith.constant 0 : index
    %9 = vector.load %arg3[%c0_4, %c0_5] : memref<1x128xf32, #tpu.memory_space<vmem>>, vector<1x128xf32>
    %10 = vector.broadcast %9 : vector<1x128xf32> to vector<2x128xf32>
    %11 = arith.addf %8, %10 : vector<2x128xf32>
    %cst_6 = arith.constant 0.000000e+00 : f32
    %12 = vector.broadcast %cst_6 : f32 to vector<2x128xf32>
    %13 = arith.maximumf %11, %12 : vector<2x128xf32>
    %14 = arith.truncf %13 : vector<2x128xf32> to vector<2x128xbf16>
    %c0_7 = arith.constant 0 : index
    %c0_8 = arith.constant 0 : index
    %15 = vector.load %arg4[%c0_7, %c0_8] : memref<128x128xbf16, #tpu.memory_space<vmem>>, vector<128x128xbf16>
    %cst_9 = arith.constant dense<0.000000e+00> : vector<2x128xf32>
    %16 = tpu.matmul %14, %15, %cst_9 {dimension_numbers = #tpu.dot_dimension_numbers<[1], [0], [0], [1], [0, 0, 1, 1], [], []>} : vector<2x128xbf16>, vector<128x128xbf16>, vector<2x128xf32> -> vector<2x128xf32>
    %c0_10 = arith.constant 0 : index
    %c0_11 = arith.constant 0 : index
    %17 = vector.load %arg5[%c0_10, %c0_11] : memref<1x128xf32, #tpu.memory_space<vmem>>, vector<1x128xf32>
    %18 = vector.broadcast %17 : vector<1x128xf32> to vector<2x128xf32>
    %19 = arith.addf %16, %18 : vector<2x128xf32>
    %c0_12 = arith.constant 0 : index
    %c0_13 = arith.constant 0 : index
    %20 = vector.load %arg6[%c0_12, %c0_13] : memref<2x128xf32, #tpu.memory_space<vmem>>, vector<2x128xf32>
    tpu.vector_store %arg6[%c0_12, %c0_13], %19 {strides = array<i32>} : memref<2x128xf32, #tpu.memory_space<vmem>>, vector<2x128xf32>,
    return
  }
  func.func @transform_0(%arg0: i32) -> (i32, i32) {
    %c0_i32 = arith.constant 0 : i32
    %c0_i32_0 = arith.constant 0 : i32
    return %arg0, %c0_i32 : i32, i32
  }
  func.func @transform_1(%arg0: i32) -> (i32, i32) {
    %c0_i32 = arith.constant 0 : i32
    %c0_i32_0 = arith.constant 0 : i32
    %c0_i32_1 = arith.constant 0 : i32
    return %c0_i32, %c0_i32_0 : i32, i32
  }
  func.func @transform_2(%arg0: i32) -> (i32, i32) {
    %c0_i32 = arith.constant 0 : i32
    %c0_i32_0 = arith.constant 0 : i32
    %c0_i32_1 = arith.constant 0 : i32
    return %c0_i32, %c0_i32_0 : i32, i32
  }
  func.func @transform_3(%arg0: i32) -> (i32, i32) {
    %c0_i32 = arith.constant 0 : i32
    %c0_i32_0 = arith.constant 0 : i32
    %c0_i32_1 = arith.constant 0 : i32
    return %c0_i32, %c0_i32_0 : i32, i32
  }
  func.func @transform_4(%arg0: i32) -> (i32, i32) {
    %c0_i32 = arith.constant 0 : i32
    %c0_i32_0 = arith.constant 0 : i32
    %c0_i32_1 = arith.constant 0 : i32
    return %c0_i32, %c0_i32_0 : i32, i32
  }
  func.func @transform_5(%arg0: i32) -> (i32, i32) {
    %c0_i32 = arith.constant 0 : i32
    %c0_i32_0 = arith.constant 0 : i32
    return %arg0, %c0_i32 : i32, i32
  }
}

</mosaic_0001>

<llo_original>
// kernel: tpu_custom_call.1
$region0: #{tpu_custom_call.1}
  #allocation0 [shape = 'u32[]', space=smem, size = 0x4, offset = 0x4, fixed_abs, tag = 'smem constant byte address 0x4 - core index']
  #allocation1 [shape = 'u32[144,128]{1,0:T(1,128)}', space=vmem, size = 0x12000, scoped, tag = 'internal scratch']
  %s0 = inlined_call_operand.hbm [shape: f32[2,32], index: 0, kind: input, shape index: {}]
  %s1 = inlined_call_operand.hbm [shape: bf16[128,128], index: 1, kind: input, shape index: {}]
  %s2 = inlined_call_operand.vmem [shape: f32[1,128], index: 2, kind: input, shape index: {}]
  %s3 = inlined_call_operand.hbm [shape: bf16[128,128], index: 3, kind: input, shape index: {}]
  %s4 = inlined_call_operand.vmem [shape: f32[1,128], index: 4, kind: input, shape index: {}]
  %s5 = inlined_call_operand.hbm [shape: f32[2,128], index: 5, kind: output, shape index: {}]
  %s6 = sld [smem:[#allocation0]]
  $region42: #{tpu_custom_call.1} parent=0
    _
  %s8 = ssub.s32 1, %s6
  %s9 = scalar_select 0, %s8, %s6
  $region1: #{tpu_custom_call.1} parent=0
    #allocation2 [shape = 'u8[1024]{0}', space=vmem, size = 0x400, scoped, tag = 'input window, operand 0, single buffered']
    #allocation3 [shape = 's32[1]{0}', space=sflag, size = 0x4, scoped, tag = 'scoped memory for tpu_custom_call.1']
    #allocation4 [shape = 's32[1]{0}', space=sflag, size = 0x4, scoped, tag = 'scoped memory for tpu_custom_call.1']
    #allocation5 [shape = 'u8[32768]{0}', space=vmem, size = 0x8000, scoped, tag = 'input window, operand 1, single buffered']
    #allocation6 [shape = 's32[1]{0}', space=sflag, size = 0x4, scoped, tag = 'scoped memory for tpu_custom_call.1']
    #allocation7 [shape = 'u8[32768]{0}', space=vmem, size = 0x8000, scoped, tag = 'input window, operand 3, single buffered']
    #allocation8 [shape = 'u8[1024]{0}', space=vmem, size = 0x400, scoped, tag = 'output window, operand 0, single buffered']
    %10 = vsyncpa [#allocation3], 0
    %11 = vsyncpa [#allocation6], 0
    %12 = vsyncpa [#allocation4], 0
    // Predicated region
    $region2: #{tpu_custom_call.1} parent=1 // pred_check
      _
    $region3: #{tpu_custom_call.1} parent=1 // pred_check_branch
      %14 = sbr.rel (0) target = $region5
    $region4: #{tpu_custom_call.1} parent=1 // pred_region
      %s16 = ssub.s32 32, 32
      %17 = vsyncadd [#allocation3], %s16
      %s19 = sshll.u32 [#allocation2], 4
      %s20 = int_to_ptr.vmem [resolvable:$true] %s19
      %22 = dma.hbm_to_vmem [thread:$0]  %s0, 32, %s20, [#allocation3]
    $region5: #{tpu_custom_call.1} parent=1 // pred_fallthru
      _
    // Predicated region
    $region6: #{tpu_custom_call.1} parent=1 // pred_check
      _
    $region7: #{tpu_custom_call.1} parent=1 // pred_check_branch
      %24 = sbr.rel (0) target = $region9
    $region8: #{tpu_custom_call.1} parent=1 // pred_region
      %s26 = ssub.s32 1024, 1024
      %27 = vsyncadd [#allocation6], %s26
      %s28 = sshll.u32 [#allocation5], 4
      %s29 = int_to_ptr.vmem [resolvable:$true] %s28
      %34 = dma.hbm_to_vmem [thread:$0]  %s1, 1024, %s29, [#allocation6], 64, 64, 4
    $region9: #{tpu_custom_call.1} parent=1 // pred_fallthru
      _
    // Predicated region
    $region10: #{tpu_custom_call.1} parent=1 // pred_check
      _
    $region11: #{tpu_custom_call.1} parent=1 // pred_check_branch
      %36 = sbr.rel (0) target = $region13
    $region12: #{tpu_custom_call.1} parent=1 // pred_region
      _
    $region13: #{tpu_custom_call.1} parent=1 // pred_fallthru
      _
    // Predicated region
    $region14: #{tpu_custom_call.1} parent=1 // pred_check
      _
    $region15: #{tpu_custom_call.1} parent=1 // pred_check_branch
      %38 = sbr.rel (0) target = $region17
    $region16: #{tpu_custom_call.1} parent=1 // pred_region
      %s40 = ssub.s32 1024, 1024
      %41 = vsyncadd [#allocation6], %s40
      %s42 = sshll.u32 [#allocation7], 4
      %s43 = int_to_ptr.vmem [resolvable:$true] %s42
      %48 = dma.hbm_to_vmem [thread:$0]  %s3, 1024, %s43, [#allocation6], 64, 64, 4
    $region17: #{tpu_custom_call.1} parent=1 // pred_fallthru
      _
    // Predicated region
    $region18: #{tpu_custom_call.1} parent=1 // pred_check
      _
    $region19: #{tpu_custom_call.1} parent=1 // pred_check_branch
      %50 = sbr.rel (0) target = $region21
    $region20: #{tpu_custom_call.1} parent=1 // pred_region
      _
    $region21: #{tpu_custom_call.1} parent=1 // pred_fallthru
      _
    // Predicated region
    $region22: #{tpu_custom_call.1} parent=1 // pred_check
      _
    $region23: #{tpu_custom_call.1} parent=1 // pred_check_branch
      %52 = sbr.rel (0) target = $region25
    $region24: #{tpu_custom_call.1} parent=1 // pred_region
      %53 = dma.done [#allocation3], 32
    $region25: #{tpu_custom_call.1} parent=1 // pred_fallthru
      _
    // Predicated region
    $region26: #{tpu_custom_call.1} parent=1 // pred_check
      _
    $region27: #{tpu_custom_call.1} parent=1 // pred_check_branch
      %55 = sbr.rel (0) target = $region29
    $region28: #{tpu_custom_call.1} parent=1 // pred_region
      %56 = dma.done [#allocation6], 1024
    $region29: #{tpu_custom_call.1} parent=1 // pred_fallthru
      _
    // Predicated region
    $region30: #{tpu_custom_call.1} parent=1 // pred_check
      _
    $region31: #{tpu_custom_call.1} parent=1 // pred_check_branch
      %58 = sbr.rel (0) target = $region33
    $region32: #{tpu_custom_call.1} parent=1 // pred_region
      %59 = dma.done [#allocation6], 1024
    $region33: #{tpu_custom_call.1} parent=1 // pred_fallthru
      _
    %v61 = vld [vmem:[#allocation2] sm:$0x3]
    %v62 = vpack.c.bf16 %v61, %v61
    %v63 = vlaneseq
    %v64 = vand.u32 %v63, 127
    %vm65 = vcmp.lt.s32.totalorder %v64, 32
    %vm66 = vmpackc.low %vm65, %vm65
    %v67 = vsel %vm66, %v62, 0
    %v68 = vld [vmem:[#allocation5] sm:$0xf]
    %v69 = vld [vmem:[#allocation5 + $0x4] sm:$0xf]
    %v70 = vld [vmem:[#allocation5 + $0x8] sm:$0xf]
    %v71 = vld [vmem:[#allocation5 + $0xc] sm:$0xf]
    %v72 = vld [vmem:[#allocation5 + $0x10] sm:$0xf]
    %v73 = vld [vmem:[#allocation5 + $0x14] sm:$0xf]
    %v74 = vld [vmem:[#allocation5 + $0x18] sm:$0xf]
    %v75 = vld [vmem:[#allocation5 + $0x1c] sm:$0xf]
    %v76 = vld [vmem:[#allocation5 + $0x20] sm:$0xf]
    %v77 = vld [vmem:[#allocation5 + $0x24] sm:$0xf]
    %v78 = vld [vmem:[#allocation5 + $0x28] sm:$0xf]
    %v79 = vld [vmem:[#allocation5 + $0x2c] sm:$0xf]
    %v80 = vld [vmem:[#allocation5 + $0x30] sm:$0xf]
    %v81 = vld [vmem:[#allocation5 + $0x34] sm:$0xf]
    %v82 = vld [vmem:[#allocation5 + $0x38] sm:$0xf]
    %v83 = vld [vmem:[#allocation5 + $0x3c] sm:$0xf]
    %v84 = vld [vmem:[%s2] sm:$0x1]
    %v86 = vlaneseq
    %v87 = vshrl.u32 %v86, 7
    %v88 = vsub.s32 0, %v87
    %v89 = vrot.slane %v84, %v88
    %v107 = vunpack.c.l.b16 %v68
    %v108 = vunpack.c.l.b16 %v69
    %v109 = vunpack.c.l.b16 %v70
    %v110 = vunpack.c.l.b16 %v71
    %v111 = vunpack.c.l.b16 %v72
    %v112 = vunpack.c.l.b16 %v73
    %v113 = vunpack.c.l.b16 %v74
    %v114 = vunpack.c.l.b16 %v75
    %v115 = vunpack.c.l.b16 %v76
    %v116 = vunpack.c.l.b16 %v77
    %v117 = vunpack.c.l.b16 %v78
    %v118 = vunpack.c.l.b16 %v79
    %v119 = vunpack.c.l.b16 %v80
    %v120 = vunpack.c.l.b16 %v81
    %v121 = vunpack.c.l.b16 %v82
    %v122 = vunpack.c.l.b16 %v83
    %v123 = vpack.c.b16 %v108, %v107
    %v124 = vpack.c.b16 %v110, %v109
    %v125 = vpack.c.b16 %v112, %v111
    %v126 = vpack.c.b16 %v114, %v113
    %v127 = vpack.c.b16 %v116, %v115
    %v128 = vpack.c.b16 %v118, %v117
    %v129 = vpack.c.b16 %v120, %v119
    %v130 = vpack.c.b16 %v122, %v121
    %139 = vmatprep.subr.bf16.mxu0 0
    %140 = vmatpush1.bf16.msra.mxu0 %v130
    %141 = vmatprep.subr.bf16.mxu0 0
    %142 = vmatpush1.bf16.msra.mxu0 %v129
    %143 = vmatprep.subr.bf16.mxu0 0
    %144 = vmatpush1.bf16.msra.mxu0 %v128
    %145 = vmatprep.subr.bf16.mxu0 0
    %146 = vmatpush1.bf16.msra.mxu0 %v127
    %147 = vmatprep.subr.bf16.mxu0 0
    %148 = vmatpush1.bf16.msra.mxu0 %v126
    %149 = vmatprep.subr.bf16.mxu0 0
    %150 = vmatpush1.bf16.msra.mxu0 %v125
    %151 = vmatprep.subr.bf16.mxu0 0
    %152 = vmatpush1.bf16.msra.mxu0 %v124
    %153 = vmatprep.subr.bf16.mxu0 0
    %154 = vmatpush1.bf16.msra.mxu0 %v123
    %155 = vmatprep.subr.bf16.mxu0 0
    %156 = vmatpush2.bf16.msra.mxu0 0
    %157 = vmatprep.subr.bf16.mxu0 0
    %158 = vmatpush2.bf16.msra.mxu0 0
    %159 = vmatprep.subr.bf16.mxu0 0
    %160 = vmatpush2.bf16.msra.mxu0 0
    %161 = vmatprep.subr.bf16.mxu0 0
    %162 = vmatpush2.bf16.msra.mxu0 0
    %163 = vmatprep.subr.bf16.mxu0 0
    %164 = vmatpush2.bf16.msra.mxu0 0
    %165 = vmatprep.subr.bf16.mxu0 0
    %166 = vmatpush2.bf16.msra.mxu0 0
    %167 = vmatprep.subr.bf16.mxu0 0
    %168 = vmatpush2.bf16.msra.mxu0 0
    %169 = vmatprep.subr.bf16.mxu0 0
    %170 = vmatpush2.bf16.msra.mxu0 0
    %171 = vmatprep.mubr.bf16.mxu0 0
    %172 = vmatmul.mubr.bf16.gmra.mxu0 %v67
    %v173 = vpop.f32.mrf.mxu0
    %v174 = vadd.f32 %v89, %v173
    %v175 = vpop.f32.mrf.mxu0
    %v176 = vpop.f32.mrf.mxu0
    %v177 = vpop.f32.mrf.mxu0
    %178 = vdwg.mxu0
    %v179 = vmax.f32 %v174, 0.0
    %v180 = vpack.c.bf16 %v179, %v179
    %v181 = vld [vmem:[#allocation7] sm:$0xf]
    %v182 = vld [vmem:[#allocation7 + $0x4] sm:$0xf]
    %v183 = vld [vmem:[#allocation7 + $0x8] sm:$0xf]
    %v184 = vld [vmem:[#allocation7 + $0xc] sm:$0xf]
    %v185 = vld [vmem:[#allocation7 + $0x10] sm:$0xf]
    %v186 = vld [vmem:[#allocation7 + $0x14] sm:$0xf]
    %v187 = vld [vmem:[#allocation7 + $0x18] sm:$0xf]
    %v188 = vld [vmem:[#allocation7 + $0x1c] sm:$0xf]
    %v189 = vld [vmem:[#allocation7 + $0x20] sm:$0xf]
    %v190 = vld [vmem:[#allocation7 + $0x24] sm:$0xf]
    %v191 = vld [vmem:[#allocation7 + $0x28] sm:$0xf]
    %v192 = vld [vmem:[#allocation7 + $0x2c] sm:$0xf]
    %v193 = vld [vmem:[#allocation7 + $0x30] sm:$0xf]
    %v194 = vld [vmem:[#allocation7 + $0x34] sm:$0xf]
    %v195 = vld [vmem:[#allocation7 + $0x38] sm:$0xf]
    %v196 = vld [vmem:[#allocation7 + $0x3c] sm:$0xf]
    %v197 = vld [vmem:[%s4] sm:$0x1]
    %v199 = vlaneseq
    %v200 = vshrl.u32 %v199, 7
    %v201 = vsub.s32 0, %v200
    %v202 = vrot.slane %v197, %v201
    %v220 = vunpack.c.l.b16 %v181
    %v221 = vunpack.c.l.b16 %v182
    %v222 = vunpack.c.l.b16 %v183
    %v223 = vunpack.c.l.b16 %v184
    %v224 = vunpack.c.l.b16 %v185
    %v225 = vunpack.c.l.b16 %v186
    %v226 = vunpack.c.l.b16 %v187
    %v227 = vunpack.c.l.b16 %v188
    %v228 = vunpack.c.l.b16 %v189
    %v229 = vunpack.c.l.b16 %v190
    %v230 = vunpack.c.l.b16 %v191
    %v231 = vunpack.c.l.b16 %v192
    %v232 = vunpack.c.l.b16 %v193
    %v233 = vunpack.c.l.b16 %v194
    %v234 = vunpack.c.l.b16 %v195
    %v235 = vunpack.c.l.b16 %v196
    %v236 = vpack.c.b16 %v221, %v220
    %v237 = vpack.c.b16 %v223, %v222
    %v238 = vpack.c.b16 %v225, %v224
    %v239 = vpack.c.b16 %v227, %v226
    %v240 = vpack.c.b16 %v229, %v228
    %v241 = vpack.c.b16 %v231, %v230
    %v242 = vpack.c.b16 %v233, %v232
    %v243 = vpack.c.b16 %v235, %v234
    %252 = vmatprep.subr.bf16.mxu0 0
    %253 = vmatpush1.bf16.msra.mxu0 %v243
    %254 = vmatprep.subr.bf16.mxu0 0
    %255 = vmatpush1.bf16.msra.mxu0 %v242
    %256 = vmatprep.subr.bf16.mxu0 0
    %257 = vmatpush1.bf16.msra.mxu0 %v241
    %258 = vmatprep.subr.bf16.mxu0 0
    %259 = vmatpush1.bf16.msra.mxu0 %v240
    %260 = vmatprep.subr.bf16.mxu0 0
    %261 = vmatpush1.bf16.msra.mxu0 %v239
    %262 = vmatprep.subr.bf16.mxu0 0
    %263 = vmatpush1.bf16.msra.mxu0 %v238
    %264 = vmatprep.subr.bf16.mxu0 0
    %265 = vmatpush1.bf16.msra.mxu0 %v237
    %266 = vmatprep.subr.bf16.mxu0 0
    %267 = vmatpush1.bf16.msra.mxu0 %v236
    %268 = vmatprep.subr.bf16.mxu0 0
    %269 = vmatpush2.bf16.msra.mxu0 0
    %270 = vmatprep.subr.bf16.mxu0 0
    %271 = vmatpush2.bf16.msra.mxu0 0
    %272 = vmatprep.subr.bf16.mxu0 0
    %273 = vmatpush2.bf16.msra.mxu0 0
    %274 = vmatprep.subr.bf16.mxu0 0
    %275 = vmatpush2.bf16.msra.mxu0 0
    %276 = vmatprep.subr.bf16.mxu0 0
    %277 = vmatpush2.bf16.msra.mxu0 0
    %278 = vmatprep.subr.bf16.mxu0 0
    %279 = vmatpush2.bf16.msra.mxu0 0
    %280 = vmatprep.subr.bf16.mxu0 0
    %281 = vmatpush2.bf16.msra.mxu0 0
    %282 = vmatprep.subr.bf16.mxu0 0
    %283 = vmatpush2.bf16.msra.mxu0 0
    %284 = vmatprep.mubr.bf16.mxu0 0
    %285 = vmatmul.mubr.bf16.gmra.mxu0 %v180
    %v286 = vpop.f32.mrf.mxu0
    %v287 = vadd.f32 %v202, %v286
    %v288 = vpop.f32.mrf.mxu0
    %v289 = vpop.f32.mrf.mxu0
    %v290 = vpop.f32.mrf.mxu0
    %291 = vdwg.mxu0
    %292 = vst [vmem:[#allocation8] sm:$0x3] %v287
    // Predicated region
    $region34: #{tpu_custom_call.1} parent=1 // pred_check
      _
    $region35: #{tpu_custom_call.1} parent=1 // pred_check_branch
      %294 = sbr.rel (0) target = $region37
    $region36: #{tpu_custom_call.1} parent=1 // pred_region
      %s296 = ssub.s32 32, 32
      %297 = vsyncadd [#allocation4], %s296
      %s299 = sshll.u32 [#allocation8], 4
      %s300 = int_to_ptr.vmem [resolvable:$true] %s299
      %302 = dma.vmem_to_hbm [thread:$0]  %s300, 32, %s5, [#allocation4]
    $region37: #{tpu_custom_call.1} parent=1 // pred_fallthru
      _
    // Predicated region
    $region38: #{tpu_custom_call.1} parent=1 // pred_check
      _
    $region39: #{tpu_custom_call.1} parent=1 // pred_check_branch
      %304 = sbr.rel (0) target = $region41
    $region40: #{tpu_custom_call.1} parent=1 // pred_region
      %305 = dma.done [#allocation4], 32
    $region41: #{tpu_custom_call.1} parent=1 // pred_fallthru
      _
    %306 = vsyncpa [#allocation3], 1
    %307 = vsyncpa [#allocation6], 1
    %308 = vsyncpa [#allocation4], 1

</llo_original>
